<compile_context>
chip_gen: v7x
topology: tpu7x:2x2x1
jax: 0.10.0
libtpu: 0.0.40
codegen_flags: <defaults>
</compile_context>

<pallas_src>
import functools

import jax
import jax.numpy as jnp
from jax.experimental import pallas as pl
from jax.experimental.pallas import tpu as pltpu

LANE = 128       # vreg lane width
SUB = 8          # vreg sublane height (f32)
TM_MAX = 4096    # rows per block: 4096*128*4B = 2 MiB f32, 4 MiB double-buffered


def _sublane_multiple(dtype):
    # f32 tiles are (8,128); bf16/int8 packing needs block heights that are
    # multiples of 16 / 32 respectively.
    itemsize = jnp.dtype(dtype).itemsize
    return SUB * max(1, 4 // max(1, itemsize))


def _tensorcores_per_chip():
    # v7x has 2 TensorCores per chip; v5e/v6e have 1. Best-effort detection.
    try:
        kind = jax.devices()[0].device_kind.lower()
    except Exception:
        return 1
    return 2 if "v7" in kind else 1


def _maxsq_kernel(num_rows, tm, blocks_per_part, ignore_index,
                  prob_ref, sum_ref, cnt_ref):
    part = pl.program_id(0)    # megacore partition ("parallel")
    step = pl.program_id(1)    # streaming block within the partition ("arbitrary")

    @pl.when(step == 0)
    def _():
        sum_ref[...] = jnp.zeros_like(sum_ref)
        cnt_ref[...] = jnp.zeros_like(cnt_ref)

    blk = part * blocks_per_part + step     # global, un-clamped block index
    ign = jnp.float32(ignore_index)

    def accumulate(valid, p):
        # `valid`: bool mask of elements entering the mean; `p`: f32 block.
        m_f = valid.astype(jnp.float32)
        # Select (not multiply) so unspecified out-of-range rows of edge blocks
        # can never poison the sum with 0 * inf / nan.
        sq = jnp.where(valid, p * p, jnp.float32(0.0))
        # Square sums: VPU reduction into a single resident (8, 128) tile.
        sum_ref[...] += sq.reshape(tm // SUB, SUB, LANE).sum(axis=0)
        # Counts: column reduction on the otherwise-idle MXU. Exact, since m_f
        # is 0/1 (bf16 passes lose nothing). Every output row holds the full
        # per-lane count, so the wrapper reads one row per partition.
        ones_lhs = jnp.ones((SUB, tm), jnp.float32)
        cnt_ref[...] += jnp.dot(ones_lhs, m_f, preferred_element_type=jnp.float32)

    # Partial last block or clamped overshoot block of the last partition.
    is_edge = blk * tm + tm > num_rows

    @pl.when(jnp.logical_not(is_edge))
    def _full_block():
        # Fast path (all interior blocks): value mask only, no row mask.
        p = prob_ref[...].astype(jnp.float32)
        accumulate(p != ign, p)

    @pl.when(is_edge)
    def _edge_block():
        # Slow path (at most one block per partition): additionally mask rows
        # past the end of the array (their contents are unspecified).
        p = prob_ref[...].astype(jnp.float32)
        row_ids = blk * tm + jax.lax.broadcasted_iota(jnp.int32, (tm, 1), 0)
        accumulate((row_ids < num_rows) & (p != ign), p)


def max_square_loss(pred, prob, ignore_index=-1):
    """Pallas implementation of MaxSquareloss.forward (pred is unused, as in PyTorch)."""
    del pred  # not used by the reference forward pass

    flat = prob.reshape(-1)
    n = flat.shape[0]

    sub_mult = _sublane_multiple(prob.dtype)
    num_rows_total = n // LANE

    if num_rows_total < sub_mult:
        # Tensor smaller than one (sub_mult, 128) block: not worth a kernel.
        n_main, num_rows, tm = 0, 0, 0
    else:
        num_rows = num_rows_total
        n_main = num_rows * LANE
        # Block height: largest dtype-aligned multiple <= num_rows, capped.
        tm = min(TM_MAX, (num_rows // sub_mult) * sub_mult)

    # <128-element tail (or the whole tensor on the tiny fallback path) is a
    # negligible plain-JAX fold - no full-tensor pad / copy.
    tail = flat[n_main:]
    tail_valid = tail != ignore_index
    tail_sum = jnp.sum(jnp.where(tail_valid, tail.astype(jnp.float32) ** 2,
                                 jnp.float32(0.0)))
    tail_cnt = jnp.sum(tail_valid.astype(jnp.float32))

    if num_rows == 0:
        total_sum, total_cnt = tail_sum, tail_cnt
    else:
        # TODO(synk): for n % 128 != 0, XLA may still materialize this prefix
        # slice before the custom call; a manual-DMA 1-D kernel could avoid it.
        x2d = flat[:n_main].reshape(num_rows, LANE)

        num_blocks = pl.cdiv(num_rows, tm)
        num_tc = _tensorcores_per_chip()
        num_parts = num_tc if (num_tc > 1 and num_blocks >= num_tc) else 1
        blocks_per_part = pl.cdiv(num_blocks, num_parts)
        last_block = num_blocks - 1

        def in_index_map(part, step):
            # Clamp so overshoot blocks of the last partition never DMA out of
            # bounds; their rows are masked out inside the kernel.
            return (jnp.minimum(part * blocks_per_part + step, last_block), 0)

        in_spec = pl.BlockSpec((tm, LANE), in_index_map)
        if num_parts > 1 and hasattr(pl, "Buffered"):
            try:
                # v7x: 3.2 TB/s HBM makes the compute window short; keep an
                # extra DMA in flight across step boundaries.
                in_spec = pl.BlockSpec((tm, LANE), in_index_map,
                                       pipeline_mode=pl.Buffered(3))
            except TypeError:
                pass

        kernel = functools.partial(
            _maxsq_kernel, num_rows, tm, blocks_per_part, float(ignore_index))

        sum_parts, cnt_parts = pl.pallas_call(
            kernel,
            out_shape=(
                jax.ShapeDtypeStruct((num_parts * SUB, LANE), jnp.float32),
                jax.ShapeDtypeStruct((num_parts * SUB, LANE), jnp.float32),
            ),
            grid_spec=pltpu.PrefetchScalarGridSpec(
                num_scalar_prefetch=0,
                grid=(num_parts, blocks_per_part),
                in_specs=[in_spec],
                out_specs=(
                    pl.BlockSpec((SUB, LANE), lambda part, step: (part, 0)),
                    pl.BlockSpec((SUB, LANE), lambda part, step: (part, 0)),
                ),
            ),
            compiler_params=pltpu.CompilerParams(
                dimension_semantics=("parallel", "arbitrary"),
            ),
        )(x2d)

        # sum_parts rows hold sublane-partitioned partial sums: sum them all.
        # cnt_parts rows within a partition are identical full column counts
        # (MXU ones-matmul), so read one row per partition.
        total_sum = jnp.sum(sum_parts) + tail_sum
        total_cnt = jnp.sum(cnt_parts[::SUB]) + tail_cnt

    # Matches torch semantics: mean over an empty mask yields NaN. Returned as
    # a full-precision f32 scalar regardless of the input dtype.
    return -(total_sum / total_cnt) * jnp.float32(0.5)


def _reference(pred, prob, ignore_index=-1):
    mask = prob != ignore_index
    sq = prob.astype(jnp.float32) ** 2
    s = jnp.sum(jnp.where(mask, sq, 0.0))
    c = jnp.sum(mask.astype(jnp.float32))
    return -(s / c) / 2.0


if __name__ == "__main__":
    key = jax.random.PRNGKey(0)

    cases = [
        # shape,              ignore frac, rtol
        ((2, 4, 16, 16),      0.05,        1e-5),  # single full block
        ((1, 3, 7, 11),       0.00,        1e-5),  # tiny: pure-JAX fallback path
        ((1, 3, 23, 37),      0.05,        1e-5),  # partial edge block + tail
        ((1, 4, 321, 413),    0.03,        1e-4),  # multiple 4096-row blocks + edge + tail
    ]

    for idx, (shape, p_ign, rtol) in enumerate(cases):
        kk = jax.random.fold_in(key, idx)
        ka, kb, kc = jax.random.split(kk, 3)
        pred = jax.random.normal(ka, shape, dtype=jnp.float32)
        # prob: softmax probabilities over the channel axis, with a sprinkle of
        # ignore_index values to exercise the mask.
        prob = jax.nn.softmax(jax.random.normal(kb, shape, dtype=jnp.float32), axis=1)
        if p_ign > 0:
            ign_mask = jax.random.bernoulli(kc, p_ign, shape)
            prob = jnp.where(ign_mask, jnp.float32(-1.0), prob)

        loss = jax.block_until_ready(max_square_loss(pred, prob, ignore_index=-1))
        ref = _reference(pred, prob, ignore_index=-1)
        assert jnp.allclose(loss, ref, rtol=rtol, atol=1e-6), (idx, loss, ref)

    print("KERNEL_OK")
</pallas_src>

<mosaic_0001>
module attributes {stable_mosaic.version = 11 : i64} {
  func.func @_maxsq_kernel(%arg0: i32, %arg1: i32, %arg2: memref<16x128xf32, #tpu.memory_space<vmem>>, %arg3: memref<8x128xf32, #tpu.memory_space<vmem>>, %arg4: memref<8x128xf32, #tpu.memory_space<vmem>>) attributes {dimension_semantics = [#tpu.dimension_semantics<parallel>, #tpu.dimension_semantics<arbitrary>], iteration_bounds = array<i64: 1, 1>, scalar_prefetch = 0 : i64, scratch_operands = 0 : i64, tpu.core_type = #tpu.core_type<tc>, window_params = [{transform_indices = @transform_0, window_bounds = array<i64: 16, 128>}, {transform_indices = @transform_1, window_bounds = array<i64: 8, 128>}, {transform_indices = @transform_2, window_bounds = array<i64: 8, 128>}]} {
    %c0_i32 = arith.constant 0 : i32
    %0 = arith.cmpi eq, %arg1, %c0_i32 : i32
    %1 = arith.extui %0 : i1 to i32
    %c0_i32_0 = arith.constant 0 : i32
    %2 = arith.cmpi ne, %1, %c0_i32_0 : i32
    scf.if %2 {
      %cst_6 = arith.constant 0.000000e+00 : f32
      %13 = vector.broadcast %cst_6 : f32 to vector<8x128xf32>
      %c0 = arith.constant 0 : index
      %c0_7 = arith.constant 0 : index
      %14 = vector.load %arg3[%c0, %c0_7] : memref<8x128xf32, #tpu.memory_space<vmem>>, vector<8x128xf32>
      tpu.vector_store %arg3[%c0, %c0_7], %13 {strides = array<i32>} : memref<8x128xf32, #tpu.memory_space<vmem>>, vector<8x128xf32>,
      %cst_8 = arith.constant 0.000000e+00 : f32
      %15 = vector.broadcast %cst_8 : f32 to vector<8x128xf32>
      %c0_9 = arith.constant 0 : index
      %c0_10 = arith.constant 0 : index
      %16 = vector.load %arg4[%c0_9, %c0_10] : memref<8x128xf32, #tpu.memory_space<vmem>>, vector<8x128xf32>
      tpu.vector_store %arg4[%c0_9, %c0_10], %15 {strides = array<i32>} : memref<8x128xf32, #tpu.memory_space<vmem>>, vector<8x128xf32>,
    } else {
    }
    %c1_i32 = arith.constant 1 : i32
    %3 = arith.muli %arg0, %c1_i32 : i32
    %4 = arith.addi %3, %arg1 : i32
    %c16_i32 = arith.constant 16 : i32
    %5 = arith.muli %4, %c16_i32 : i32
    %c16_i32_1 = arith.constant 16 : i32
    %6 = arith.addi %5, %c16_i32_1 : i32
    %c16_i32_2 = arith.constant 16 : i32
    %7 = arith.cmpi sgt, %6, %c16_i32_2 : i32
    %true = arith.constant true
    %8 = arith.xori %7, %true : i1
    %9 = arith.extui %8 : i1 to i32
    %cst = arith.constant -1.000000e+00 : f32
    %c0_i32_3 = arith.constant 0 : i32
    %10 = arith.cmpi ne, %9, %c0_i32_3 : i32
    scf.if %10 {
      %c0 = arith.constant 0 : index
      %c0_6 = arith.constant 0 : index
      %13 = vector.load %arg2[%c0, %c0_6] : memref<16x128xf32, #tpu.memory_space<vmem>>, vector<16x128xf32>
      %14 = vector.broadcast %cst : f32 to vector<16x128xf32>
      %15 = arith.cmpf one, %13, %14 : vector<16x128xf32>
      %16 = arith.extui %15 : vector<16x128xi1> to vector<16x128xi32>
      %17 = arith.sitofp %16 : vector<16x128xi32> to vector<16x128xf32>
      %18 = arith.mulf %13, %13 : vector<16x128xf32>
      %cst_7 = arith.constant 0.000000e+00 : f32
      %19 = vector.broadcast %cst_7 : f32 to vector<16x128xf32>
      %20 = arith.select %15, %18, %19 : vector<16x128xi1>, vector<16x128xf32>
      %c0_8 = arith.constant 0 : index
      %c0_9 = arith.constant 0 : index
      %21 = vector.load %arg3[%c0_8, %c0_9] : memref<8x128xf32, #tpu.memory_space<vmem>>, vector<8x128xf32>
      %22 = vector.shape_cast %20 : vector<16x128xf32> to vector<2x8x128xf32>
      %cst_10 = arith.constant dense<0.000000e+00> : vector<8x128xf32>
      %23 = vector.multi_reduction <add>, %22, %cst_10 [0] : vector<2x8x128xf32> to vector<8x128xf32>
      %24 = arith.addf %21, %23 : vector<8x128xf32>
      %c0_11 = arith.constant 0 : index
      %c0_12 = arith.constant 0 : index
      %25 = vector.load %arg3[%c0_11, %c0_12] : memref<8x128xf32, #tpu.memory_space<vmem>>, vector<8x128xf32>
      tpu.vector_store %arg3[%c0_11, %c0_12], %24 {strides = array<i32>} : memref<8x128xf32, #tpu.memory_space<vmem>>, vector<8x128xf32>,
      %cst_13 = arith.constant 1.000000e+00 : f32
      %26 = vector.broadcast %cst_13 : f32 to vector<8x16xf32>
      %c0_14 = arith.constant 0 : index
      %c0_15 = arith.constant 0 : index
      %27 = vector.load %arg4[%c0_14, %c0_15] : memref<8x128xf32, #tpu.memory_space<vmem>>, vector<8x128xf32>
      %cst_16 = arith.constant dense<0.000000e+00> : vector<8x128xf32>
      %28 = tpu.matmul %26, %17, %cst_16 {dimension_numbers = #tpu.dot_dimension_numbers<[1], [0], [0], [1], [0, 0, 1, 1], [], []>} : vector<8x16xf32>, vector<16x128xf32>, vector<8x128xf32> -> vector<8x128xf32>
      %29 = arith.addf %27, %28 : vector<8x128xf32>
      %c0_17 = arith.constant 0 : index
      %c0_18 = arith.constant 0 : index
      %30 = vector.load %arg4[%c0_17, %c0_18] : memref<8x128xf32, #tpu.memory_space<vmem>>, vector<8x128xf32>
      tpu.vector_store %arg4[%c0_17, %c0_18], %29 {strides = array<i32>} : memref<8x128xf32, #tpu.memory_space<vmem>>, vector<8x128xf32>,
    } else {
    }
    %11 = arith.extui %7 : i1 to i32
    %cst_4 = arith.constant -1.000000e+00 : f32
    %c0_i32_5 = arith.constant 0 : i32
    %12 = arith.cmpi ne, %11, %c0_i32_5 : i32
    scf.if %12 {
      %c0 = arith.constant 0 : index
      %c0_6 = arith.constant 0 : index
      %13 = vector.load %arg2[%c0, %c0_6] : memref<16x128xf32, #tpu.memory_space<vmem>>, vector<16x128xf32>
      %c16_i32_7 = arith.constant 16 : i32
      %14 = arith.muli %4, %c16_i32_7 : i32
      %15 = tpu.iota {dimensions = array<i32: 0>} : vector<16x1xi32>
      %16 = vector.broadcast %14 : i32 to vector<16x1xi32>
      %17 = arith.addi %16, %15 : vector<16x1xi32>
      %c16_i32_8 = arith.constant 16 : i32
      %18 = vector.broadcast %c16_i32_8 : i32 to vector<16x1xi32>
      %19 = arith.cmpi slt, %17, %18 : vector<16x1xi32>
      %20 = vector.broadcast %cst_4 : f32 to vector<16x128xf32>
      %21 = arith.cmpf one, %13, %20 : vector<16x128xf32>
      %22 = vector.broadcast %19 : vector<16x1xi1> to vector<16x128xi1>
      %23 = arith.andi %22, %21 : vector<16x128xi1>
      %24 = arith.extui %23 : vector<16x128xi1> to vector<16x128xi32>
      %25 = arith.sitofp %24 : vector<16x128xi32> to vector<16x128xf32>
      %26 = arith.mulf %13, %13 : vector<16x128xf32>
      %cst_9 = arith.constant 0.000000e+00 : f32
      %27 = vector.broadcast %cst_9 : f32 to vector<16x128xf32>
      %28 = arith.select %23, %26, %27 : vector<16x128xi1>, vector<16x128xf32>
      %c0_10 = arith.constant 0 : index
      %c0_11 = arith.constant 0 : index
      %29 = vector.load %arg3[%c0_10, %c0_11] : memref<8x128xf32, #tpu.memory_space<vmem>>, vector<8x128xf32>
      %30 = vector.shape_cast %28 : vector<16x128xf32> to vector<2x8x128xf32>
      %cst_12 = arith.constant dense<0.000000e+00> : vector<8x128xf32>
      %31 = vector.multi_reduction <add>, %30, %cst_12 [0] : vector<2x8x128xf32> to vector<8x128xf32>
      %32 = arith.addf %29, %31 : vector<8x128xf32>
      %c0_13 = arith.constant 0 : index
      %c0_14 = arith.constant 0 : index
      %33 = vector.load %arg3[%c0_13, %c0_14] : memref<8x128xf32, #tpu.memory_space<vmem>>, vector<8x128xf32>
      tpu.vector_store %arg3[%c0_13, %c0_14], %32 {strides = array<i32>} : memref<8x128xf32, #tpu.memory_space<vmem>>, vector<8x128xf32>,
      %cst_15 = arith.constant 1.000000e+00 : f32
      %34 = vector.broadcast %cst_15 : f32 to vector<8x16xf32>
      %c0_16 = arith.constant 0 : index
      %c0_17 = arith.constant 0 : index
      %35 = vector.load %arg4[%c0_16, %c0_17] : memref<8x128xf32, #tpu.memory_space<vmem>>, vector<8x128xf32>
      %cst_18 = arith.constant dense<0.000000e+00> : vector<8x128xf32>
      %36 = tpu.matmul %34, %25, %cst_18 {dimension_numbers = #tpu.dot_dimension_numbers<[1], [0], [0], [1], [0, 0, 1, 1], [], []>} : vector<8x16xf32>, vector<16x128xf32>, vector<8x128xf32> -> vector<8x128xf32>
      %37 = arith.addf %35, %36 : vector<8x128xf32>
      %c0_19 = arith.constant 0 : index
      %c0_20 = arith.constant 0 : index
      %38 = vector.load %arg4[%c0_19, %c0_20] : memref<8x128xf32, #tpu.memory_space<vmem>>, vector<8x128xf32>
      tpu.vector_store %arg4[%c0_19, %c0_20], %37 {strides = array<i32>} : memref<8x128xf32, #tpu.memory_space<vmem>>, vector<8x128xf32>,
    } else {
    }
    return
  }
  func.func @transform_0(%arg0: i32, %arg1: i32) -> (i32, i32) {
    %c1_i32 = arith.constant 1 : i32
    %0 = arith.muli %arg0, %c1_i32 : i32
    %1 = arith.addi %0, %arg1 : i32
    %c0_i32 = arith.constant 0 : i32
    %2 = arith.minsi %1, %c0_i32 : i32
    %c0_i32_0 = arith.constant 0 : i32
    %c0_i32_1 = arith.constant 0 : i32
    return %2, %c0_i32_0 : i32, i32
  }
  func.func @transform_1(%arg0: i32, %arg1: i32) -> (i32, i32) {
    %c0_i32 = arith.constant 0 : i32
    %c0_i32_0 = arith.constant 0 : i32
    return %arg0, %c0_i32 : i32, i32
  }
  func.func @transform_2(%arg0: i32, %arg1: i32) -> (i32, i32) {
    %c0_i32 = arith.constant 0 : i32
    %c0_i32_0 = arith.constant 0 : i32
    return %arg0, %c0_i32 : i32, i32
  }
}

</mosaic_0001>

<llo_original>
// kernel: tpu_custom_call.1
$region0: #{tpu_custom_call.1}
  #allocation0 [shape = 'u32[]', space=smem, size = 0x4, offset = 0x4, fixed_abs, tag = 'smem constant byte address 0x4 - core index']
  #allocation1 [shape = 'u32[144,128]{1,0:T(1,128)}', space=vmem, size = 0x12000, scoped, tag = 'internal scratch']
  %s0 = inlined_call_operand.hbm [shape: f32[16,128], index: 0, kind: input, shape index: {}]
  %s1 = inlined_call_operand.hbm [shape: f32[8,128], index: 1, kind: output, shape index: {0}]
  %s2 = inlined_call_operand.hbm [shape: f32[8,128], index: 2, kind: output, shape index: {1}]
  %3 = xla_tuple %s1, %s2
  %s4 = sld [smem:[#allocation0]]
  $region38: #{tpu_custom_call.1} parent=0
    _
  %s6 = ssub.s32 1, %s4
  %s7 = scalar_select 0, %s6, %s4
  $region1: #{tpu_custom_call.1} parent=0
    #allocation2 [shape = 'u8[8192]{0}', space=vmem, size = 0x2000, scoped, tag = 'input window, operand 0, single buffered']
    #allocation3 [shape = 's32[1]{0}', space=sflag, size = 0x4, scoped, tag = 'scoped memory for tpu_custom_call.1']
    #allocation4 [shape = 's32[1]{0}', space=sflag, size = 0x4, scoped, tag = 'scoped memory for tpu_custom_call.1']
    #allocation5 [shape = 'u8[4096]{0}', space=vmem, size = 0x1000, scoped, tag = 'output window, operand 0, single buffered']
    #allocation6 [shape = 'u8[4096]{0}', space=vmem, size = 0x1000, scoped, tag = 'output window, operand 1, single buffered']
    #allocation7 [shape = 's32[1]{0}', space=sflag, size = 0x4, scoped, tag = 'scoped memory for tpu_custom_call.1']
    %8 = vsyncpa [#allocation3], 0
    %9 = vsyncpa [#allocation4], 0
    %10 = vsyncpa [#allocation7], 0
    // Predicated region
    $region2: #{tpu_custom_call.1} parent=1 // pred_check
      _
    $region3: #{tpu_custom_call.1} parent=1 // pred_check_branch
      %12 = sbr.rel (0) target = $region5
    $region4: #{tpu_custom_call.1} parent=1 // pred_region
      %s13 = sadd.s32 0, 0
      %p14 = scmp.lt.s32.totalorder %s13, 0
      %s15 = scalar_select %p14, %s13, 0
      %s16 = smul.u32 2, %s15
      %s18 = ssub.s32 256, 256
      %19 = vsyncadd [#allocation3], %s18
      %s20 = smul.addr %s16, 128
      %s21 = scalar_lea.hbm %s0, %s20
      %s22 = sshll.u32 [#allocation2], 4
      %s23 = int_to_ptr.vmem [resolvable:$true] %s22
      %28 = dma.hbm_to_vmem [thread:$0]  %s21, 256, %s23, [#allocation3], 128, 128, 8
    $region5: #{tpu_custom_call.1} parent=1 // pred_fallthru
      _
    // Predicated region
    $region6: #{tpu_custom_call.1} parent=1 // pred_check
      _
    $region7: #{tpu_custom_call.1} parent=1 // pred_check_branch
      %30 = sbr.rel (0) target = $region9
    $region8: #{tpu_custom_call.1} parent=1 // pred_region
      %31 = dma.done [#allocation3], 256
    $region9: #{tpu_custom_call.1} parent=1 // pred_fallthru
      _
    %s32 = sadd.s32 0, 0
    %p33 = scmp.lt.s32.totalorder %s32, 0
    %s34 = scalar_select %p33, %s32, 0
    %s35 = smul.u32 2, %s34
    %p36 = scmp.eq.s32.totalorder 0, 0
    // Predicated region
    $region10: #{tpu_custom_call.1} parent=1 // pred_check
      %p37 = pneg %p36
    $region11: #{tpu_custom_call.1} parent=1 // pred_check_branch
      %39 = sbr.rel (%p37) target = $region13
    $region12: #{tpu_custom_call.1} parent=1 // pred_region
      %40 = vst [vmem:[#allocation5] sm:$0xff] 0.0
      %41 = vst [vmem:[#allocation6] sm:$0xff] 0.0
    $region13: #{tpu_custom_call.1} parent=1 // pred_fallthru
      _
    %s42 = sadd.s32 0, 0
    %s43 = smul.u32 %s42, 16
    %s44 = sadd.s32 %s43, 16
    %p45 = scmp.gt.s32.totalorder %s44, 16
    %p46 = scmp.le.s32.totalorder %s44, 16
    // Predicated region
    $region14: #{tpu_custom_call.1} parent=1 // pred_check
      %p47 = pneg %p46
    $region15: #{tpu_custom_call.1} parent=1 // pred_check_branch
      %49 = sbr.rel (%p47) target = $region17
    $region16: #{tpu_custom_call.1} parent=1 // pred_region
      %v50 = vld [vmem:[#allocation2] sm:$0xff]
      %v51 = vld [vmem:[#allocation2 + $0x8] sm:$0xff]
      %vm52 = vcmp.ne.f32.partialorder %v50, -1.0
      %vm53 = vcmp.ne.f32.partialorder %v51, -1.0
      %v54 = vsel %vm52, 1, 0
      %v55 = vsel %vm53, 1, 0
      %v56 = vcvt.s32.f32 %v54
      %v57 = vcvt.s32.f32 %v55
      %v58 = vmul.f32 %v50, %v50
      %v59 = vmul.f32 %v51, %v51
      %v60 = vsel %vm52, %v58, 0.0
      %v61 = vsel %vm53, %v59, 0.0
      %v62 = vld [vmem:[#allocation5] sm:$0xff]
      %v63 = vadd.f32 %v60, %v61
      %v64 = vadd.f32 %v62, %v63
      %65 = vst [vmem:[#allocation5] sm:$0xff] %v64
      %v66 = vld [vmem:[#allocation6] sm:$0xff]
      %vm67 = vcmask 130048
      %v69 = vsel %vm67, 1.0, 0
      %71 = vmatprep.subr.mxu0 0.0
      %72 = vmatpush1.msra.mxu0 %v56
      %73 = vmatprep.subr.mxu0 0.0
      %74 = vmatpush1.msra.mxu0 %v57
      %75 = vmatprep.subr.mxu0 0.0
      %76 = vmatpush1.msra.mxu0 0.0
      %77 = vmatprep.subr.mxu0 0.0
      %78 = vmatpush1.msra.mxu0 0.0
      %79 = vmatprep.subr.mxu0 0.0
      %80 = vmatpush1.msra.mxu0 0.0
      %81 = vmatprep.subr.mxu0 0.0
      %82 = vmatpush1.msra.mxu0 0.0
      %83 = vmatprep.subr.mxu0 0.0
      %84 = vmatpush1.msra.mxu0 0.0
      %85 = vmatprep.subr.mxu0 0.0
      %86 = vmatpush1.msra.mxu0 0.0
      %87 = vmatprep.subr.mxu0 0.0
      %88 = vmatpush1.msra.mxu0 0.0
      %89 = vmatprep.subr.mxu0 0.0
      %90 = vmatpush1.msra.mxu0 0.0
      %91 = vmatprep.subr.mxu0 0.0
      %92 = vmatpush1.msra.mxu0 0.0
      %93 = vmatprep.subr.mxu0 0.0
      %94 = vmatpush1.msra.mxu0 0.0
      %95 = vmatprep.subr.mxu0 0.0
      %96 = vmatpush1.msra.mxu0 0.0
      %97 = vmatprep.subr.mxu0 0.0
      %98 = vmatpush1.msra.mxu0 0.0
      %99 = vmatprep.subr.mxu0 0.0
      %100 = vmatpush1.msra.mxu0 0.0
      %101 = vmatprep.subr.mxu0 0.0
      %102 = vmatpush1.msra.mxu0 0.0
      %103 = vmatprep.subr.mxu0 0.0
      %104 = vmatpush1.msra.mxu0 0.0
      %105 = vmatprep.subr.mxu0 0.0
      %106 = vmatpush1.msra.mxu0 0.0
      %107 = vmatprep.subr.mxu0 0.0
      %108 = vmatpush1.msra.mxu0 0.0
      %109 = vmatprep.subr.mxu0 0.0
      %110 = vmatpush1.msra.mxu0 0.0
      %111 = vmatprep.subr.mxu0 0.0
      %112 = vmatpush1.msra.mxu0 0.0
      %113 = vmatprep.subr.mxu0 0.0
      %114 = vmatpush1.msra.mxu0 0.0
      %115 = vmatprep.subr.mxu0 0.0
      %116 = vmatpush1.msra.mxu0 0.0
      %117 = vmatprep.subr.mxu0 0.0
      %118 = vmatpush1.msra.mxu0 0.0
      %119 = vmatprep.subr.mxu0 0.0
      %120 = vmatpush1.msra.mxu0 0.0
      %121 = vmatprep.subr.mxu0 0.0
      %122 = vmatpush1.msra.mxu0 0.0
      %123 = vmatprep.subr.mxu0 0.0
      %124 = vmatpush1.msra.mxu0 0.0
      %125 = vmatprep.subr.mxu0 0.0
      %126 = vmatpush1.msra.mxu0 0.0
      %127 = vmatprep.subr.mxu0 0.0
      %128 = vmatpush1.msra.mxu0 0.0
      %129 = vmatprep.subr.mxu0 0.0
      %130 = vmatpush1.msra.mxu0 0.0
      %131 = vmatprep.subr.mxu0 0.0
      %132 = vmatpush1.msra.mxu0 0.0
      %133 = vmatprep.subr.mxu0 0.0
      %134 = vmatpush1.msra.mxu0 0.0
      %135 = vmatprep.mubr.f32.mxu0 0.0
      %136 = vmatmul.mubr.f32.gmra.mrb[0].mxu0 %v69
      %v137 = vpop.f32.mrb[0].mxu0
      %v138 = vadd.f32 0.0, %v137
      %v139 = vpop.f32.mrb[0].mxu0
      %140 = vdwg.mxu0
      %v141 = vadd.f32 %v66, %v138
      %142 = vst [vmem:[#allocation6] sm:$0xff] %v141
    $region17: #{tpu_custom_call.1} parent=1 // pred_fallthru
      _
    // Predicated region
    $region18: #{tpu_custom_call.1} parent=1 // pred_check
      %p143 = pneg %p45
    $region19: #{tpu_custom_call.1} parent=1 // pred_check_branch
      %145 = sbr.rel (%p143) target = $region21
    $region20: #{tpu_custom_call.1} parent=1 // pred_region
      %v146 = vld [vmem:[#allocation2] sm:$0xff]
      %v147 = vld [vmem:[#allocation2 + $0x8] sm:$0xff]
      %v148 = vlaneseq
      %v149 = vshrl.u32 %v148, 7
      %v150 = vadd.s32 %v149, 8
      %v151 = vstv %s43
      %v152 = vadd.s32 %v151, %v149
      %v153 = vadd.s32 %v151, %v150
      %vm154 = vcmp.lt.s32.totalorder %v152, 16
      %vm155 = vcmp.lt.s32.totalorder %v153, 16
      %vm156 = vcmp.ne.f32.partialorder %v146, -1.0
      %vm157 = vcmp.ne.f32.partialorder %v147, -1.0
      %v158 = vsel %vm154, 1, 0
      %v159 = vsel %vm155, 1, 0
      %vm160 = vcmp.eq.s32.totalorder %v158, 1
      %vm161 = vcmp.eq.s32.totalorder %v159, 1
      %vm162 = vmand %vm160, %vm156
      %vm163 = vmand %vm161, %vm157
      %v164 = vsel %vm162, 1, 0
      %v165 = vsel %vm163, 1, 0
      %v166 = vcvt.s32.f32 %v164
      %v167 = vcvt.s32.f32 %v165
      %v168 = vmul.f32 %v146, %v146
      %v169 = vmul.f32 %v147, %v147
      %v170 = vsel %vm162, %v168, 0.0
      %v171 = vsel %vm163, %v169, 0.0
      %v172 = vld [vmem:[#allocation5] sm:$0xff]
      %v173 = vadd.f32 %v170, %v171
      %v174 = vadd.f32 %v172, %v173
      %175 = vst [vmem:[#allocation5] sm:$0xff] %v174
      %v176 = vld [vmem:[#allocation6] sm:$0xff]
      %vm177 = vcmask 130048
      %v179 = vsel %vm177, 1.0, 0
      %181 = vmatprep.subr.mxu0 0.0
      %182 = vmatpush1.msra.mxu0 %v166
      %183 = vmatprep.subr.mxu0 0.0
      %184 = vmatpush1.msra.mxu0 %v167
      %185 = vmatprep.subr.mxu0 0.0
      %186 = vmatpush1.msra.mxu0 0.0
      %187 = vmatprep.subr.mxu0 0.0
      %188 = vmatpush1.msra.mxu0 0.0
      %189 = vmatprep.subr.mxu0 0.0
      %190 = vmatpush1.msra.mxu0 0.0
      %191 = vmatprep.subr.mxu0 0.0
      %192 = vmatpush1.msra.mxu0 0.0
      %193 = vmatprep.subr.mxu0 0.0
      %194 = vmatpush1.msra.mxu0 0.0
      %195 = vmatprep.subr.mxu0 0.0
      %196 = vmatpush1.msra.mxu0 0.0
      %197 = vmatprep.subr.mxu0 0.0
      %198 = vmatpush1.msra.mxu0 0.0
      %199 = vmatprep.subr.mxu0 0.0
      %200 = vmatpush1.msra.mxu0 0.0
      %201 = vmatprep.subr.mxu0 0.0
      %202 = vmatpush1.msra.mxu0 0.0
      %203 = vmatprep.subr.mxu0 0.0
      %204 = vmatpush1.msra.mxu0 0.0
      %205 = vmatprep.subr.mxu0 0.0
      %206 = vmatpush1.msra.mxu0 0.0
      %207 = vmatprep.subr.mxu0 0.0
      %208 = vmatpush1.msra.mxu0 0.0
      %209 = vmatprep.subr.mxu0 0.0
      %210 = vmatpush1.msra.mxu0 0.0
      %211 = vmatprep.subr.mxu0 0.0
      %212 = vmatpush1.msra.mxu0 0.0
      %213 = vmatprep.subr.mxu0 0.0
      %214 = vmatpush1.msra.mxu0 0.0
      %215 = vmatprep.subr.mxu0 0.0
      %216 = vmatpush1.msra.mxu0 0.0
      %217 = vmatprep.subr.mxu0 0.0
      %218 = vmatpush1.msra.mxu0 0.0
      %219 = vmatprep.subr.mxu0 0.0
      %220 = vmatpush1.msra.mxu0 0.0
      %221 = vmatprep.subr.mxu0 0.0
      %222 = vmatpush1.msra.mxu0 0.0
      %223 = vmatprep.subr.mxu0 0.0
      %224 = vmatpush1.msra.mxu0 0.0
      %225 = vmatprep.subr.mxu0 0.0
      %226 = vmatpush1.msra.mxu0 0.0
      %227 = vmatprep.subr.mxu0 0.0
      %228 = vmatpush1.msra.mxu0 0.0
      %229 = vmatprep.subr.mxu0 0.0
      %230 = vmatpush1.msra.mxu0 0.0
      %231 = vmatprep.subr.mxu0 0.0
      %232 = vmatpush1.msra.mxu0 0.0
      %233 = vmatprep.subr.mxu0 0.0
      %234 = vmatpush1.msra.mxu0 0.0
      %235 = vmatprep.subr.mxu0 0.0
      %236 = vmatpush1.msra.mxu0 0.0
      %237 = vmatprep.subr.mxu0 0.0
      %238 = vmatpush1.msra.mxu0 0.0
      %239 = vmatprep.subr.mxu0 0.0
      %240 = vmatpush1.msra.mxu0 0.0
      %241 = vmatprep.subr.mxu0 0.0
      %242 = vmatpush1.msra.mxu0 0.0
      %243 = vmatprep.subr.mxu0 0.0
      %244 = vmatpush1.msra.mxu0 0.0
      %245 = vmatprep.mubr.f32.mxu0 0.0
      %246 = vmatmul.mubr.f32.gmra.mrb[0].mxu0 %v179
      %v247 = vpop.f32.mrb[0].mxu0
      %v248 = vadd.f32 0.0, %v247
      %v249 = vpop.f32.mrb[0].mxu0
      %250 = vdwg.mxu0
      %v251 = vadd.f32 %v176, %v248
      %252 = vst [vmem:[#allocation6] sm:$0xff] %v251
    $region21: #{tpu_custom_call.1} parent=1 // pred_fallthru
      _
    // Predicated region
    $region22: #{tpu_custom_call.1} parent=1 // pred_check
      _
    $region23: #{tpu_custom_call.1} parent=1 // pred_check_branch
      %254 = sbr.rel (0) target = $region25
    $region24: #{tpu_custom_call.1} parent=1 // pred_region
      %s256 = ssub.s32 128, 128
      %257 = vsyncadd [#allocation4], %s256
      %s259 = sshll.u32 [#allocation5], 4
      %s260 = int_to_ptr.vmem [resolvable:$true] %s259
      %262 = dma.vmem_to_hbm [thread:$0]  %s260, 128, %s1, [#allocation4]
    $region25: #{tpu_custom_call.1} parent=1 // pred_fallthru
      _
    // Predicated region
    $region26: #{tpu_custom_call.1} parent=1 // pred_check
      _
    $region27: #{tpu_custom_call.1} parent=1 // pred_check_branch
      %264 = sbr.rel (0) target = $region29
    $region28: #{tpu_custom_call.1} parent=1 // pred_region
      %s266 = ssub.s32 128, 128
      %267 = vsyncadd [#allocation7], %s266
      %s269 = sshll.u32 [#allocation6], 4
      %s270 = int_to_ptr.vmem [resolvable:$true] %s269
      %272 = dma.vmem_to_hbm [thread:$0]  %s270, 128, %s2, [#allocation7]
    $region29: #{tpu_custom_call.1} parent=1 // pred_fallthru
      _
    // Predicated region
    $region30: #{tpu_custom_call.1} parent=1 // pred_check
      _
    $region31: #{tpu_custom_call.1} parent=1 // pred_check_branch
      %274 = sbr.rel (0) target = $region33
    $region32: #{tpu_custom_call.1} parent=1 // pred_region
      %275 = dma.done [#allocation4], 128
    $region33: #{tpu_custom_call.1} parent=1 // pred_fallthru
      _
    // Predicated region
    $region34: #{tpu_custom_call.1} parent=1 // pred_check
      _
    $region35: #{tpu_custom_call.1} parent=1 // pred_check_branch
      %277 = sbr.rel (0) target = $region37
    $region36: #{tpu_custom_call.1} parent=1 // pred_region
      %278 = dma.done [#allocation7], 128
    $region37: #{tpu_custom_call.1} parent=1 // pred_fallthru
      _
    %279 = vsyncpa [#allocation3], 1
    %280 = vsyncpa [#allocation4], 1
    %281 = vsyncpa [#allocation7], 1

</llo_original>
